<compile_context>
chip_gen: v7x
topology: tpu7x:2x2x1
jax: 0.10.0
libtpu: 0.0.40
codegen_flags: <defaults>
</compile_context>

<pallas_src>
import functools

import jax
import jax.numpy as jnp
import numpy as np
from jax.experimental import pallas as pl
from jax.experimental.pallas import tpu as pltpu


def _round_up(x, m):
    return ((x + m - 1) // m) * m


def _sine_layer_kernel(x_ref, w_ref, b_ref, o_ref):
    # x_ref: (TM, K), w_ref: (K, Np) resident, b_ref: (1, Np) resident.
    # omega_0 is already folded into w_ref / b_ref at init time.
    z = jnp.dot(x_ref[...], w_ref[...], preferred_element_type=jnp.float32)
    z = z + b_ref[...]                      # broadcast (1, Np) over (TM, Np)
    o_ref[...] = jnp.sin(z).astype(o_ref.dtype)


def init_sine_layer(key, in_features, out_features, *, is_first=False,
                    omega_0=30.0, param_dtype=jnp.float32):
    """SIREN init matching SineLayer.init_weights(), returned kernel-ready.

    One-time preparation (outside the per-call hot path):
      * weight stored pre-transposed as (in_features, N_pad),
      * omega_0 folded into both weight and bias,
      * N padded to a multiple of 128 for lane-dense MXU columns / stores.
    Returns (w_kn, b_row, aux) where aux holds the reference (PyTorch-layout)
    weight/bias for correctness checks.
    """
    wkey, bkey = jax.random.split(key)
    if is_first:
        bound_w = 1.0 / in_features
    else:
        bound_w = float(np.sqrt(6.0 / in_features) / omega_0)
    weight = jax.random.uniform(
        wkey, (out_features, in_features), jnp.float32,
        minval=-bound_w, maxval=bound_w)
    # nn.Linear default bias init: U(-1/sqrt(in_features), 1/sqrt(in_features))
    bound_b = 1.0 / float(np.sqrt(in_features))
    bias = jax.random.uniform(
        bkey, (out_features,), jnp.float32, minval=-bound_b, maxval=bound_b)

    n_pad = _round_up(out_features, 128)
    w_kn = (omega_0 * weight.T)                                   # (K, N)
    w_kn = jnp.pad(w_kn, ((0, 0), (0, n_pad - out_features)))
    b_row = (omega_0 * bias).reshape(1, out_features)
    b_row = jnp.pad(b_row, ((0, 0), (0, n_pad - out_features)))

    aux = {"weight": weight, "bias": bias, "omega_0": float(omega_0)}
    return w_kn.astype(param_dtype), b_row.astype(jnp.float32), aux


@functools.partial(jax.jit, static_argnames=("n_out", "block_m"))
def sine_layer_forward(x, w_kn, b_row, *, n_out, block_m=1024):
    """x: (M, in_features); w_kn: (in_features, N_pad) omega-folded, transposed;
    b_row: (1, N_pad) omega-folded.  Returns (M, n_out)."""
    M, K = x.shape
    Kw, n_pad = w_kn.shape
    assert Kw == K, "weight / input feature mismatch"

    # Batch tile: as large as requested but never larger than (padded) M,
    # always a multiple of 8 (sublane alignment).
    tm = min(block_m, _round_up(M, 8))
    m_pad = _round_up(M, tm)
    x_p = jnp.pad(x, ((0, m_pad - M), (0, 0))) if m_pad != M else x

    out = pl.pallas_call(
        _sine_layer_kernel,
        out_shape=jax.ShapeDtypeStruct((m_pad, n_pad), x.dtype),
        grid_spec=pltpu.PrefetchScalarGridSpec(
            num_scalar_prefetch=0,
            grid=(m_pad // tm,),
            in_specs=[
                pl.BlockSpec((tm, K), lambda i: (i, 0)),     # x: tiled over batch
                pl.BlockSpec((K, n_pad), lambda i: (0, 0)),  # W': VMEM-resident
                pl.BlockSpec((1, n_pad), lambda i: (0, 0)),  # b': VMEM-resident
            ],
            out_specs=pl.BlockSpec((tm, n_pad), lambda i: (i, 0)),
        ),
        compiler_params=pltpu.CompilerParams(
            # batch tiles are independent -> shard across TensorCores (v7x).
            dimension_semantics=("parallel",),
            # headroom below v7x's 64 MiB physical VMEM.
            vmem_limit_bytes=48 * 1024 * 1024,
        ),
    )(x_p, w_kn, b_row)

    return out[:M, :n_out]


if __name__ == "__main__":
    key = jax.random.PRNGKey(0)
    k_in, k_params = jax.random.split(key)

    # Small demo shapes: first SIREN layer, lane-dense hidden width.
    batch, in_features, out_features = 100, 8, 128   # batch exercises padding
    omega_0 = 30.0
    is_first = True

    x = jax.random.normal(k_in, (batch, in_features), jnp.float32)
    w_kn, b_row, aux = init_sine_layer(
        k_params, in_features, out_features,
        is_first=is_first, omega_0=omega_0)

    out = sine_layer_forward(x, w_kn, b_row, n_out=out_features, block_m=1024)
    out = jax.block_until_ready(out)

    # Correctness check against pure-JAX reference in original PyTorch layout.
    ref = jnp.sin(aux["omega_0"] * (x @ aux["weight"].T + aux["bias"]))
    np.testing.assert_allclose(np.asarray(out), np.asarray(ref),
                               rtol=5e-5, atol=5e-5)
    assert out.shape == (batch, out_features)
    print("KERNEL_OK")
</pallas_src>

<mosaic_0001>
module attributes {stable_mosaic.version = 11 : i64} {
  func.func @_sine_layer_kernel(%arg0: i32, %arg1: memref<104x8xf32, #tpu.memory_space<vmem>>, %arg2: memref<8x128xf32, #tpu.memory_space<vmem>>, %arg3: memref<1x128xf32, #tpu.memory_space<vmem>>, %arg4: memref<104x128xf32, #tpu.memory_space<vmem>>) attributes {dimension_semantics = [#tpu.dimension_semantics<parallel>], iteration_bounds = array<i64: 1>, scalar_prefetch = 0 : i64, scratch_operands = 0 : i64, tpu.core_type = #tpu.core_type<tc>, window_params = [{transform_indices = @transform_0, window_bounds = array<i64: 104, 8>}, {pipeline_mode = #tpu.pipeline_mode<synchronous>, transform_indices = @transform_1, window_bounds = array<i64: 8, 128>}, {pipeline_mode = #tpu.pipeline_mode<synchronous>, transform_indices = @transform_2, window_bounds = array<i64: 1, 128>}, {transform_indices = @transform_3, window_bounds = array<i64: 104, 128>}]} {
    %c0 = arith.constant 0 : index
    %c0_0 = arith.constant 0 : index
    %0 = vector.load %arg1[%c0, %c0_0] : memref<104x8xf32, #tpu.memory_space<vmem>>, vector<104x8xf32>
    %c0_1 = arith.constant 0 : index
    %c0_2 = arith.constant 0 : index
    %1 = vector.load %arg2[%c0_1, %c0_2] : memref<8x128xf32, #tpu.memory_space<vmem>>, vector<8x128xf32>
    %cst = arith.constant dense<0.000000e+00> : vector<104x128xf32>
    %2 = tpu.matmul %0, %1, %cst {dimension_numbers = #tpu.dot_dimension_numbers<[1], [0], [0], [1], [0, 0, 1, 1], [], []>} : vector<104x8xf32>, vector<8x128xf32>, vector<104x128xf32> -> vector<104x128xf32>
    %c0_3 = arith.constant 0 : index
    %c0_4 = arith.constant 0 : index
    %3 = vector.load %arg3[%c0_3, %c0_4] : memref<1x128xf32, #tpu.memory_space<vmem>>, vector<1x128xf32>
    %4 = vector.broadcast %3 : vector<1x128xf32> to vector<104x128xf32>
    %5 = arith.addf %2, %4 : vector<104x128xf32>
    %6 = math.sin %5 : vector<104x128xf32>
    %c0_5 = arith.constant 0 : index
    %c0_6 = arith.constant 0 : index
    %7 = vector.load %arg4[%c0_5, %c0_6] : memref<104x128xf32, #tpu.memory_space<vmem>>, vector<104x128xf32>
    tpu.vector_store %arg4[%c0_5, %c0_6], %6 {strides = array<i32>} : memref<104x128xf32, #tpu.memory_space<vmem>>, vector<104x128xf32>,
    return
  }
  func.func @transform_0(%arg0: i32) -> (i32, i32) {
    %c0_i32 = arith.constant 0 : i32
    %c0_i32_0 = arith.constant 0 : i32
    return %arg0, %c0_i32 : i32, i32
  }
  func.func @transform_1(%arg0: i32) -> (i32, i32) {
    %c0_i32 = arith.constant 0 : i32
    %c0_i32_0 = arith.constant 0 : i32
    %c0_i32_1 = arith.constant 0 : i32
    return %c0_i32, %c0_i32_0 : i32, i32
  }
  func.func @transform_2(%arg0: i32) -> (i32, i32) {
    %c0_i32 = arith.constant 0 : i32
    %c0_i32_0 = arith.constant 0 : i32
    %c0_i32_1 = arith.constant 0 : i32
    return %c0_i32, %c0_i32_0 : i32, i32
  }
  func.func @transform_3(%arg0: i32) -> (i32, i32) {
    %c0_i32 = arith.constant 0 : i32
    %c0_i32_0 = arith.constant 0 : i32
    return %arg0, %c0_i32 : i32, i32
  }
}

</mosaic_0001>

<llo_original>
// kernel: sine_layer_forward.1
$region0: #{sine_layer_forward.1}
  #allocation0 [shape = 'u32[]', space=smem, size = 0x4, offset = 0x4, fixed_abs, tag = 'smem constant byte address 0x4 - core index']
  #allocation1 [shape = 'u32[144,128]{1,0:T(1,128)}', space=vmem, size = 0x12000, scoped, tag = 'internal scratch']
  %s0 = inlined_call_operand.vmem [shape: f32[104,8], index: 0, kind: input, shape index: {}]
  %s1 = inlined_call_operand.vmem [shape: f32[8,128], index: 1, kind: input, shape index: {}]
  %s2 = inlined_call_operand.vmem [shape: f32[1,128], index: 2, kind: input, shape index: {}]
  %s3 = inlined_call_operand.hbm [shape: f32[104,128], index: 3, kind: output, shape index: {}]
  %s4 = sld [smem:[#allocation0]]
  $region22: #{sine_layer_forward.1} parent=0
    _
  %s6 = ssub.s32 1, %s4
  %s7 = scalar_select 0, %s6, %s4
  $region1: #{sine_layer_forward.1} parent=0
    #allocation2 [shape = 'u8[53248]{0}', space=vmem, size = 0xd000, scoped, tag = 'output window, operand 0, single buffered']
    #allocation3 [shape = 's32[1]{0}', space=sflag, size = 0x4, scoped, tag = 'scoped memory for sine_layer_forward.1']
    %8 = vsyncpa [#allocation3], 0
    // Predicated region
    $region2: #{sine_layer_forward.1} parent=1 // pred_check
      _
    $region3: #{sine_layer_forward.1} parent=1 // pred_check_branch
      %10 = sbr.rel (0) target = $region5
    $region4: #{sine_layer_forward.1} parent=1 // pred_region
      _
    $region5: #{sine_layer_forward.1} parent=1 // pred_fallthru
      _
    // Predicated region
    $region6: #{sine_layer_forward.1} parent=1 // pred_check
      _
    $region7: #{sine_layer_forward.1} parent=1 // pred_check_branch
      %12 = sbr.rel (0) target = $region9
    $region8: #{sine_layer_forward.1} parent=1 // pred_region
      _
    $region9: #{sine_layer_forward.1} parent=1 // pred_fallthru
      _
    // Predicated region
    $region10: #{sine_layer_forward.1} parent=1 // pred_check
      _
    $region11: #{sine_layer_forward.1} parent=1 // pred_check_branch
      %14 = sbr.rel (0) target = $region13
    $region12: #{sine_layer_forward.1} parent=1 // pred_region
      _
    $region13: #{sine_layer_forward.1} parent=1 // pred_fallthru
      _
    %v15 = vld [vmem:[%s0] sm:$0xff]
    %v16 = vld [vmem:[%s0 + $0x8] sm:$0xff]
    %v17 = vld [vmem:[%s0 + $0x10] sm:$0xff]
    %v18 = vld [vmem:[%s0 + $0x18] sm:$0xff]
    %v19 = vld [vmem:[%s0 + $0x20] sm:$0xff]
    %v20 = vld [vmem:[%s0 + $0x28] sm:$0xff]
    %v21 = vld [vmem:[%s0 + $0x30] sm:$0xff]
    %v22 = vld [vmem:[%s0 + $0x38] sm:$0xff]
    %v23 = vld [vmem:[%s0 + $0x40] sm:$0xff]
    %v24 = vld [vmem:[%s0 + $0x48] sm:$0xff]
    %v25 = vld [vmem:[%s0 + $0x50] sm:$0xff]
    %v26 = vld [vmem:[%s0 + $0x58] sm:$0xff]
    %v27 = vld [vmem:[%s0 + $0x60] sm:$0xff]
    %v28 = vld [vmem:[%s1] sm:$0xff]
    %v29 = vld [vmem:[%s2] sm:$0x1]
    %v31 = vlaneseq
    %v32 = vshrl.u32 %v31, 7
    %v33 = vsub.s32 0, %v32
    %v34 = vrot.slane %v29, %v33
    %vm36 = vcmask 64512
    %v38 = vsel %vm36, %v15, 0
    %v41 = vsel %vm36, %v16, 0
    %v44 = vsel %vm36, %v17, 0
    %v47 = vsel %vm36, %v18, 0
    %v50 = vsel %vm36, %v19, 0
    %v53 = vsel %vm36, %v20, 0
    %v56 = vsel %vm36, %v21, 0
    %v59 = vsel %vm36, %v22, 0
    %v62 = vsel %vm36, %v23, 0
    %v65 = vsel %vm36, %v24, 0
    %v68 = vsel %vm36, %v25, 0
    %v71 = vsel %vm36, %v26, 0
    %v74 = vsel %vm36, %v27, 0
    %76 = vmatprep.subr.mxu0 0.0
    %77 = vmatpush1.msra.mxu0 %v28
    %78 = vmatprep.subr.mxu0 0.0
    %79 = vmatpush1.msra.mxu0 0.0
    %80 = vmatprep.subr.mxu0 0.0
    %81 = vmatpush1.msra.mxu0 0.0
    %82 = vmatprep.subr.mxu0 0.0
    %83 = vmatpush1.msra.mxu0 0.0
    %84 = vmatprep.subr.mxu0 0.0
    %85 = vmatpush1.msra.mxu0 0.0
    %86 = vmatprep.subr.mxu0 0.0
    %87 = vmatpush1.msra.mxu0 0.0
    %88 = vmatprep.subr.mxu0 0.0
    %89 = vmatpush1.msra.mxu0 0.0
    %90 = vmatprep.subr.mxu0 0.0
    %91 = vmatpush1.msra.mxu0 0.0
    %92 = vmatprep.subr.mxu0 0.0
    %93 = vmatpush1.msra.mxu0 0.0
    %94 = vmatprep.subr.mxu0 0.0
    %95 = vmatpush1.msra.mxu0 0.0
    %96 = vmatprep.subr.mxu0 0.0
    %97 = vmatpush1.msra.mxu0 0.0
    %98 = vmatprep.subr.mxu0 0.0
    %99 = vmatpush1.msra.mxu0 0.0
    %100 = vmatprep.subr.mxu0 0.0
    %101 = vmatpush1.msra.mxu0 0.0
    %102 = vmatprep.subr.mxu0 0.0
    %103 = vmatpush1.msra.mxu0 0.0
    %104 = vmatprep.subr.mxu0 0.0
    %105 = vmatpush1.msra.mxu0 0.0
    %106 = vmatprep.subr.mxu0 0.0
    %107 = vmatpush1.msra.mxu0 0.0
    %108 = vmatprep.subr.mxu0 0.0
    %109 = vmatpush1.msra.mxu0 0.0
    %110 = vmatprep.subr.mxu0 0.0
    %111 = vmatpush1.msra.mxu0 0.0
    %112 = vmatprep.subr.mxu0 0.0
    %113 = vmatpush1.msra.mxu0 0.0
    %114 = vmatprep.subr.mxu0 0.0
    %115 = vmatpush1.msra.mxu0 0.0
    %116 = vmatprep.subr.mxu0 0.0
    %117 = vmatpush1.msra.mxu0 0.0
    %118 = vmatprep.subr.mxu0 0.0
    %119 = vmatpush1.msra.mxu0 0.0
    %120 = vmatprep.subr.mxu0 0.0
    %121 = vmatpush1.msra.mxu0 0.0
    %122 = vmatprep.subr.mxu0 0.0
    %123 = vmatpush1.msra.mxu0 0.0
    %124 = vmatprep.subr.mxu0 0.0
    %125 = vmatpush1.msra.mxu0 0.0
    %126 = vmatprep.subr.mxu0 0.0
    %127 = vmatpush1.msra.mxu0 0.0
    %128 = vmatprep.subr.mxu0 0.0
    %129 = vmatpush1.msra.mxu0 0.0
    %130 = vmatprep.subr.mxu0 0.0
    %131 = vmatpush1.msra.mxu0 0.0
    %132 = vmatprep.subr.mxu0 0.0
    %133 = vmatpush1.msra.mxu0 0.0
    %134 = vmatprep.subr.mxu0 0.0
    %135 = vmatpush1.msra.mxu0 0.0
    %136 = vmatprep.subr.mxu0 0.0
    %137 = vmatpush1.msra.mxu0 0.0
    %138 = vmatprep.subr.mxu0 0.0
    %139 = vmatpush1.msra.mxu0 0.0
    %140 = vmatprep.mubr.f32.mxu0 0.0
    %141 = vmatmul.mubr.f32.gmra.mrb[0].mxu0 %v38
    %v142 = vpop.f32.mrb[0].mxu0
    %v143 = vadd.f32 %v34, %v142
    %v144 = vpop.f32.mrb[0].mxu0
    %145 = vmatprep.mubr.f32.mxu0 0.0
    %146 = vmatmul.mubr.f32.gmra.mrb[0].mxu0 %v41
    %v147 = vpop.f32.mrb[0].mxu0
    %v148 = vadd.f32 %v34, %v147
    %v149 = vpop.f32.mrb[0].mxu0
    %150 = vmatprep.mubr.f32.mxu0 0.0
    %151 = vmatmul.mubr.f32.gmra.mrb[0].mxu0 %v44
    %v152 = vpop.f32.mrb[0].mxu0
    %v153 = vadd.f32 %v34, %v152
    %v154 = vpop.f32.mrb[0].mxu0
    %155 = vmatprep.mubr.f32.mxu0 0.0
    %156 = vmatmul.mubr.f32.gmra.mrb[0].mxu0 %v47
    %v157 = vpop.f32.mrb[0].mxu0
    %v158 = vadd.f32 %v34, %v157
    %v159 = vpop.f32.mrb[0].mxu0
    %160 = vmatprep.mubr.f32.mxu0 0.0
    %161 = vmatmul.mubr.f32.gmra.mrb[0].mxu0 %v50
    %v162 = vpop.f32.mrb[0].mxu0
    %v163 = vadd.f32 %v34, %v162
    %v164 = vpop.f32.mrb[0].mxu0
    %165 = vmatprep.mubr.f32.mxu0 0.0
    %166 = vmatmul.mubr.f32.gmra.mrb[0].mxu0 %v53
    %v167 = vpop.f32.mrb[0].mxu0
    %v168 = vadd.f32 %v34, %v167
    %v169 = vpop.f32.mrb[0].mxu0
    %170 = vmatprep.mubr.f32.mxu0 0.0
    %171 = vmatmul.mubr.f32.gmra.mrb[0].mxu0 %v56
    %v172 = vpop.f32.mrb[0].mxu0
    %v173 = vadd.f32 %v34, %v172
    %v174 = vpop.f32.mrb[0].mxu0
    %175 = vmatprep.mubr.f32.mxu0 0.0
    %176 = vmatmul.mubr.f32.gmra.mrb[0].mxu0 %v59
    %v177 = vpop.f32.mrb[0].mxu0
    %v178 = vadd.f32 %v34, %v177
    %v179 = vpop.f32.mrb[0].mxu0
    %180 = vmatprep.mubr.f32.mxu0 0.0
    %181 = vmatmul.mubr.f32.gmra.mrb[0].mxu0 %v62
    %v182 = vpop.f32.mrb[0].mxu0
    %v183 = vadd.f32 %v34, %v182
    %v184 = vpop.f32.mrb[0].mxu0
    %185 = vmatprep.mubr.f32.mxu0 0.0
    %186 = vmatmul.mubr.f32.gmra.mrb[0].mxu0 %v65
    %v187 = vpop.f32.mrb[0].mxu0
    %v188 = vadd.f32 %v34, %v187
    %v189 = vpop.f32.mrb[0].mxu0
    %190 = vmatprep.mubr.f32.mxu0 0.0
    %191 = vmatmul.mubr.f32.gmra.mrb[0].mxu0 %v68
    %v192 = vpop.f32.mrb[0].mxu0
    %v193 = vadd.f32 %v34, %v192
    %v194 = vpop.f32.mrb[0].mxu0
    %195 = vmatprep.mubr.f32.mxu0 0.0
    %196 = vmatmul.mubr.f32.gmra.mrb[0].mxu0 %v71
    %v197 = vpop.f32.mrb[0].mxu0
    %v198 = vadd.f32 %v34, %v197
    %v199 = vpop.f32.mrb[0].mxu0
    %200 = vmatprep.mubr.f32.mxu0 0.0
    %201 = vmatmul.mubr.f32.gmra.mrb[0].mxu0 %v74
    %v202 = vpop.f32.mrb[0].mxu0
    %v203 = vadd.f32 %v34, %v202
    %v204 = vpop.f32.mrb[0].mxu0
    %205 = vdwg.mxu0
    %v206 = vand.u32 2147483647, %v143
    %vm207 = vcmp.le.f32.partialorder %v206, 0.7853982
    %vm208 = vcmp.lt.s32.totalorder %v143, 0
    %v209 = vand.u32 %v143, 2139095040
    %v210 = vshrl.u32 %v209, 23
    %v211 = vsub.s32 %v210, 127
    %v212 = vand.u32 2147483647, %v143
    %v213 = vand.u32 %v212, 8388607
    %v214 = vor.u32 %v213, 8388608
    %v215 = vsub.s32 0, %v214
    %v216 = vadd.s32 %v211, 1
    %vm217 = vcmp.gt.s32.totalorder %v216, 0
    %v218 = vsel %vm217, %v216, 0
    %v219 = vshrl.u32 %v218, 5
    %v220 = vand.u32 %v218, 31
    %v221 = vsub.s32 32, %v220
    %v222 = vshrl.u32 683565275, %v221
    %v223 = vshll.u32 683565275, %v220
    %v224 = vshrl.u32 2475754826, %v221
    %v225 = vor.u32 %v223, %v224
    %v226 = vshll.u32 2475754826, %v220
    %v227 = vshrl.u32 2131351028, %v221
    %v228 = vor.u32 %v226, %v227
    %v229 = vshll.u32 2131351028, %v220
    %v230 = vshrl.u32 2102212464, %v221
    %v231 = vor.u32 %v229, %v230
    %v232 = vshll.u32 2102212464, %v220
    %v233 = vshrl.u32 920167782, %v221
    %v234 = vor.u32 %v232, %v233
    %v235 = vshll.u32 920167782, %v220
    %v236 = vshrl.u32 1326507024, %v221
    %v237 = vor.u32 %v235, %v236
    %vm238 = vcmp.lt.s32.totalorder %v219, 1
    %vm239 = vcmp.lt.s32.totalorder %v219, 2
    %vm240 = vcmp.lt.s32.totalorder %v219, 3
    %vm241 = vcmp.lt.s32.totalorder %v219, 4
    %v242 = vsel %vm238, %v222, %v225
    %v243 = vsel %vm241, %v231, 2102212464
    %v244 = vsel %vm240, %v228, %v243
    %v245 = vsel %vm239, %v242, %v244
    %v246 = vsel %vm238, %v225, %v228
    %v247 = vsel %vm241, %v234, 920167782
    %v248 = vsel %vm240, %v231, %v247
    %v249 = vsel %vm239, %v246, %v248
    %v250 = vsel %vm238, %v228, %v231
    %v251 = vsel %vm241, %v237, 1326507024
    %v252 = vsel %vm240, %v234, %v251
    %v253 = vsel %vm239, %v250, %v252
    %v254 = vshll.u32 %v214, 8
    %v255 = vmul.u32.u64.compose %v254, %v253
    %v256 = vextract.low.u32 %v255
    %v257 = vextract.high.u32 %v255
    %v258 = vmul.u32.u64.compose %v254, %v249
    %v259 = vextract.low.u32 %v258
    %v260 = vextract.high.u32 %v258
    %v261 = vmul.u32 %v254, %v245
    %v262 = vadd.s32 %v257, %v259
    %vm263 = vc.u32 %v257, %v259
    %v264 = vadd.s32 %v260, 1
    %v265 = vsel %vm263, %v264, %v260
    %v266 = vadd.s32 %v261, %v265
    %v267 = vadd.s32 %v266, 536870912
    %v268 = vshrl.u32 %v267, 30
    %v269 = vshll.u32 %v268, 30
    %v270 = vsub.s32 %v266, %v269
    %vm271 = vcmp.lt.s32.totalorder %v270, 0
    %v272 = vsub.s32 0, %v270
    %v273 = vsel %vm271, %v272, %v270
    %v274 = vclz %v273
    %v275 = vsub.s32 %v274, 2
    %vm276 = vcmp.gt.s32.totalorder 0, %v275
    %v277 = vsel %vm276, 0, %v275
    %v278 = vsub.s32 32, %v277
    %v279 = vshll.u32 %v270, %v277
    %v280 = vshrl.u32 %v262, %v278
    %v281 = vor.u32 %v279, %v280
    %v282 = vsub.s32 4294967266, %v277
    %v283 = vadd.s32 %v282, 127
    %v284 = vshll.u32 %v283, 23
    %v285 = vor.u32 4788187, %v284
    %v286 = vand.u32 2147483647, %v285
    %v288 = vcvt.s32.f32 %v281
    %v289 = vmul.f32 %v288, %v286
    %v290 = vxor.u32 %v289, 2147483648
    %v291 = vsel %vm208, %v290, %v289
    %v292 = vsub.s32 4, %v268
    %v293 = vsel %vm208, %v292, %v268
    %v294 = vsel %vm207, %v143, %v291
    %v295 = vsel %vm207, 0, %v293
    %v296 = vcosq.f32.pop %v294
    %v297 = vsinq.f32.pop %v294
    %vm298 = vweird.f32 %v143
    %v299 = vadd.s32 %v295, 3
    %v300 = vand.u32 %v299, 3
    %vm301 = vcmp.lt.s32.totalorder %v300, 2
    %vm302 = vcmp.eq.s32.totalorder %v300, 0
    %v303 = vxor.u32 %v297, 2147483648
    %v304 = vsel %vm302, %v296, %v303
    %vm305 = vcmp.eq.s32.totalorder %v300, 2
    %v306 = vxor.u32 %v296, 2147483648
    %v307 = vsel %vm305, %v306, %v297
    %v308 = vsel %vm301, %v304, %v307
    %v309 = vsel %vm298, nan, %v308
    %v310 = vand.u32 2147483647, %v148
    %vm311 = vcmp.le.f32.partialorder %v310, 0.7853982
    %vm312 = vcmp.lt.s32.totalorder %v148, 0
    %v313 = vand.u32 %v148, 2139095040
    %v314 = vshrl.u32 %v313, 23
    %v315 = vsub.s32 %v314, 127
    %v316 = vand.u32 2147483647, %v148
    %v317 = vand.u32 %v316, 8388607
    %v318 = vor.u32 %v317, 8388608
    %v319 = vsub.s32 0, %v318
    %v320 = vadd.s32 %v315, 1
    %vm321 = vcmp.gt.s32.totalorder %v320, 0
    %v322 = vsel %vm321, %v320, 0
    %v323 = vshrl.u32 %v322, 5
    %v324 = vand.u32 %v322, 31
    %v325 = vsub.s32 32, %v324
    %v326 = vshrl.u32 683565275, %v325
    %v327 = vshll.u32 683565275, %v324
    %v328 = vshrl.u32 2475754826, %v325
    %v329 = vor.u32 %v327, %v328
    %v330 = vshll.u32 2475754826, %v324
    %v331 = vshrl.u32 2131351028, %v325
    %v332 = vor.u32 %v330, %v331
    %v333 = vshll.u32 2131351028, %v324
    %v334 = vshrl.u32 2102212464, %v325
    %v335 = vor.u32 %v333, %v334
    %v336 = vshll.u32 2102212464, %v324
    %v337 = vshrl.u32 920167782, %v325
    %v338 = vor.u32 %v336, %v337
    %v339 = vshll.u32 920167782, %v324
    %v340 = vshrl.u32 1326507024, %v325
    %v341 = vor.u32 %v339, %v340
    %vm342 = vcmp.lt.s32.totalorder %v323, 1
    %vm343 = vcmp.lt.s32.totalorder %v323, 2
    %vm344 = vcmp.lt.s32.totalorder %v323, 3
    %vm345 = vcmp.lt.s32.totalorder %v323, 4
    %v346 = vsel %vm342, %v326, %v329
    %v347 = vsel %vm345, %v335, 2102212464
    %v348 = vsel %vm344, %v332, %v347
    %v349 = vsel %vm343, %v346, %v348
    %v350 = vsel %vm342, %v329, %v332
    %v351 = vsel %vm345, %v338, 920167782
    %v352 = vsel %vm344, %v335, %v351
    %v353 = vsel %vm343, %v350, %v352
    %v354 = vsel %vm342, %v332, %v335
    %v355 = vsel %vm345, %v341, 1326507024
    %v356 = vsel %vm344, %v338, %v355
    %v357 = vsel %vm343, %v354, %v356
    %v358 = vshll.u32 %v318, 8
    %v359 = vmul.u32.u64.compose %v358, %v357
    %v360 = vextract.low.u32 %v359
    %v361 = vextract.high.u32 %v359
    %v362 = vmul.u32.u64.compose %v358, %v353
    %v363 = vextract.low.u32 %v362
    %v364 = vextract.high.u32 %v362
    %v365 = vmul.u32 %v358, %v349
    %v366 = vadd.s32 %v361, %v363
    %vm367 = vc.u32 %v361, %v363
    %v368 = vadd.s32 %v364, 1
    %v369 = vsel %vm367, %v368, %v364
    %v370 = vadd.s32 %v365, %v369
    %v371 = vadd.s32 %v370, 536870912
    %v372 = vshrl.u32 %v371, 30
    %v373 = vshll.u32 %v372, 30
    %v374 = vsub.s32 %v370, %v373
    %vm375 = vcmp.lt.s32.totalorder %v374, 0
    %v376 = vsub.s32 0, %v374
    %v377 = vsel %vm375, %v376, %v374
    %v378 = vclz %v377
    %v379 = vsub.s32 %v378, 2
    %vm380 = vcmp.gt.s32.totalorder 0, %v379
    %v381 = vsel %vm380, 0, %v379
    %v382 = vsub.s32 32, %v381
    %v383 = vshll.u32 %v374, %v381
    %v384 = vshrl.u32 %v366, %v382
    %v385 = vor.u32 %v383, %v384
    %v386 = vsub.s32 4294967266, %v381
    %v387 = vadd.s32 %v386, 127
    %v388 = vshll.u32 %v387, 23
    %v389 = vor.u32 4788187, %v388
    %v390 = vand.u32 2147483647, %v389
    %v392 = vcvt.s32.f32 %v385
    %v393 = vmul.f32 %v392, %v390
    %v394 = vxor.u32 %v393, 2147483648
    %v395 = vsel %vm312, %v394, %v393
    %v396 = vsub.s32 4, %v372
    %v397 = vsel %vm312, %v396, %v372
    %v398 = vsel %vm311, %v148, %v395
    %v399 = vsel %vm311, 0, %v397
    %v400 = vcosq.f32.pop %v398
    %v401 = vsinq.f32.pop %v398
    %vm402 = vweird.f32 %v148
    %v403 = vadd.s32 %v399, 3
    %v404 = vand.u32 %v403, 3
    %vm405 = vcmp.lt.s32.totalorder %v404, 2
    %vm406 = vcmp.eq.s32.totalorder %v404, 0
    %v407 = vxor.u32 %v401, 2147483648
    %v408 = vsel %vm406, %v400, %v407
    %vm409 = vcmp.eq.s32.totalorder %v404, 2
    %v410 = vxor.u32 %v400, 2147483648
    %v411 = vsel %vm409, %v410, %v401
    %v412 = vsel %vm405, %v408, %v411
    %v413 = vsel %vm402, nan, %v412
    %v414 = vand.u32 2147483647, %v153
    %vm415 = vcmp.le.f32.partialorder %v414, 0.7853982
    %vm416 = vcmp.lt.s32.totalorder %v153, 0
    %v417 = vand.u32 %v153, 2139095040
    %v418 = vshrl.u32 %v417, 23
    %v419 = vsub.s32 %v418, 127
    %v420 = vand.u32 2147483647, %v153
    %v421 = vand.u32 %v420, 8388607
    %v422 = vor.u32 %v421, 8388608
    %v423 = vsub.s32 0, %v422
    %v424 = vadd.s32 %v419, 1
    %vm425 = vcmp.gt.s32.totalorder %v424, 0
    %v426 = vsel %vm425, %v424, 0
    %v427 = vshrl.u32 %v426, 5
    %v428 = vand.u32 %v426, 31
    %v429 = vsub.s32 32, %v428
    %v430 = vshrl.u32 683565275, %v429
    %v431 = vshll.u32 683565275, %v428
    %v432 = vshrl.u32 2475754826, %v429
    %v433 = vor.u32 %v431, %v432
    %v434 = vshll.u32 2475754826, %v428
    %v435 = vshrl.u32 2131351028, %v429
    %v436 = vor.u32 %v434, %v435
    %v437 = vshll.u32 2131351028, %v428
    %v438 = vshrl.u32 2102212464, %v429
    %v439 = vor.u32 %v437, %v438
    %v440 = vshll.u32 2102212464, %v428
    %v441 = vshrl.u32 920167782, %v429
    %v442 = vor.u32 %v440, %v441
    %v443 = vshll.u32 920167782, %v428
    %v444 = vshrl.u32 1326507024, %v429
    %v445 = vor.u32 %v443, %v444
    %vm446 = vcmp.lt.s32.totalorder %v427, 1
    %vm447 = vcmp.lt.s32.totalorder %v427, 2
    %vm448 = vcmp.lt.s32.totalorder %v427, 3
    %vm449 = vcmp.lt.s32.totalorder %v427, 4
    %v450 = vsel %vm446, %v430, %v433
    %v451 = vsel %vm449, %v439, 2102212464
    %v452 = vsel %vm448, %v436, %v451
    %v453 = vsel %vm447, %v450, %v452
    %v454 = vsel %vm446, %v433, %v436
    %v455 = vsel %vm449, %v442, 920167782
    %v456 = vsel %vm448, %v439, %v455
    %v457 = vsel %vm447, %v454, %v456
    %v458 = vsel %vm446, %v436, %v439
    %v459 = vsel %vm449, %v445, 1326507024
    %v460 = vsel %vm448, %v442, %v459
    %v461 = vsel %vm447, %v458, %v460
    %v462 = vshll.u32 %v422, 8
    %v463 = vmul.u32.u64.compose %v462, %v461
    %v464 = vextract.low.u32 %v463
    %v465 = vextract.high.u32 %v463
    %v466 = vmul.u32.u64.compose %v462, %v457
    %v467 = vextract.low.u32 %v466
    %v468 = vextract.high.u32 %v466
    %v469 = vmul.u32 %v462, %v453
    %v470 = vadd.s32 %v465, %v467
    %vm471 = vc.u32 %v465, %v467
    %v472 = vadd.s32 %v468, 1
    %v473 = vsel %vm471, %v472, %v468
    %v474 = vadd.s32 %v469, %v473
    %v475 = vadd.s32 %v474, 536870912
    %v476 = vshrl.u32 %v475, 30
    %v477 = vshll.u32 %v476, 30
    %v478 = vsub.s32 %v474, %v477
    %vm479 = vcmp.lt.s32.totalorder %v478, 0
    %v480 = vsub.s32 0, %v478
    %v481 = vsel %vm479, %v480, %v478
    %v482 = vclz %v481
    %v483 = vsub.s32 %v482, 2
    %vm484 = vcmp.gt.s32.totalorder 0, %v483
    %v485 = vsel %vm484, 0, %v483
    %v486 = vsub.s32 32, %v485
    %v487 = vshll.u32 %v478, %v485
    %v488 = vshrl.u32 %v470, %v486
    %v489 = vor.u32 %v487, %v488
    %v490 = vsub.s32 4294967266, %v485
    %v491 = vadd.s32 %v490, 127
    %v492 = vshll.u32 %v491, 23
    %v493 = vor.u32 4788187, %v492
    %v494 = vand.u32 2147483647, %v493
    %v496 = vcvt.s32.f32 %v489
    %v497 = vmul.f32 %v496, %v494
    %v498 = vxor.u32 %v497, 2147483648
    %v499 = vsel %vm416, %v498, %v497
    %v500 = vsub.s32 4, %v476
    %v501 = vsel %vm416, %v500, %v476
    %v502 = vsel %vm415, %v153, %v499
    %v503 = vsel %vm415, 0, %v501
    %v504 = vcosq.f32.pop %v502
    %v505 = vsinq.f32.pop %v502
    %vm506 = vweird.f32 %v153
    %v507 = vadd.s32 %v503, 3
    %v508 = vand.u32 %v507, 3
    %vm509 = vcmp.lt.s32.totalorder %v508, 2
    %vm510 = vcmp.eq.s32.totalorder %v508, 0
    %v511 = vxor.u32 %v505, 2147483648
    %v512 = vsel %vm510, %v504, %v511
    %vm513 = vcmp.eq.s32.totalorder %v508, 2
    %v514 = vxor.u32 %v504, 2147483648
    %v515 = vsel %vm513, %v514, %v505
    %v516 = vsel %vm509, %v512, %v515
    %v517 = vsel %vm506, nan, %v516
    %v518 = vand.u32 2147483647, %v158
    %vm519 = vcmp.le.f32.partialorder %v518, 0.7853982
    %vm520 = vcmp.lt.s32.totalorder %v158, 0
    %v521 = vand.u32 %v158, 2139095040
    %v522 = vshrl.u32 %v521, 23
    %v523 = vsub.s32 %v522, 127
    %v524 = vand.u32 2147483647, %v158
    %v525 = vand.u32 %v524, 8388607
    %v526 = vor.u32 %v525, 8388608
    %v527 = vsub.s32 0, %v526
    %v528 = vadd.s32 %v523, 1
    %vm529 = vcmp.gt.s32.totalorder %v528, 0
    %v530 = vsel %vm529, %v528, 0
    %v531 = vshrl.u32 %v530, 5
    %v532 = vand.u32 %v530, 31
    %v533 = vsub.s32 32, %v532
    %v534 = vshrl.u32 683565275, %v533
    %v535 = vshll.u32 683565275, %v532
    %v536 = vshrl.u32 2475754826, %v533
    %v537 = vor.u32 %v535, %v536
    %v538 = vshll.u32 2475754826, %v532
    %v539 = vshrl.u32 2131351028, %v533
    %v540 = vor.u32 %v538, %v539
    %v541 = vshll.u32 2131351028, %v532
    %v542 = vshrl.u32 2102212464, %v533
    %v543 = vor.u32 %v541, %v542
    %v544 = vshll.u32 2102212464, %v532
    %v545 = vshrl.u32 920167782, %v533
    %v546 = vor.u32 %v544, %v545
    %v547 = vshll.u32 920167782, %v532
    %v548 = vshrl.u32 1326507024, %v533
    %v549 = vor.u32 %v547, %v548
    %vm550 = vcmp.lt.s32.totalorder %v531, 1
    %vm551 = vcmp.lt.s32.totalorder %v531, 2
    %vm552 = vcmp.lt.s32.totalorder %v531, 3
    %vm553 = vcmp.lt.s32.totalorder %v531, 4
    %v554 = vsel %vm550, %v534, %v537
    %v555 = vsel %vm553, %v543, 2102212464
    %v556 = vsel %vm552, %v540, %v555
    %v557 = vsel %vm551, %v554, %v556
    %v558 = vsel %vm550, %v537, %v540
    %v559 = vsel %vm553, %v546, 920167782
    %v560 = vsel %vm552, %v543, %v559
    %v561 = vsel %vm551, %v558, %v560
    %v562 = vsel %vm550, %v540, %v543
    %v563 = vsel %vm553, %v549, 1326507024
    %v564 = vsel %vm552, %v546, %v563
    %v565 = vsel %vm551, %v562, %v564
    %v566 = vshll.u32 %v526, 8
    %v567 = vmul.u32.u64.compose %v566, %v565
    %v568 = vextract.low.u32 %v567
    %v569 = vextract.high.u32 %v567
    %v570 = vmul.u32.u64.compose %v566, %v561
    %v571 = vextract.low.u32 %v570
    %v572 = vextract.high.u32 %v570
    %v573 = vmul.u32 %v566, %v557
    %v574 = vadd.s32 %v569, %v571
    %vm575 = vc.u32 %v569, %v571
    %v576 = vadd.s32 %v572, 1
    %v577 = vsel %vm575, %v576, %v572
    %v578 = vadd.s32 %v573, %v577
    %v579 = vadd.s32 %v578, 536870912
    %v580 = vshrl.u32 %v579, 30
    %v581 = vshll.u32 %v580, 30
    %v582 = vsub.s32 %v578, %v581
    %vm583 = vcmp.lt.s32.totalorder %v582, 0
    %v584 = vsub.s32 0, %v582
    %v585 = vsel %vm583, %v584, %v582
    %v586 = vclz %v585
    %v587 = vsub.s32 %v586, 2
    %vm588 = vcmp.gt.s32.totalorder 0, %v587
    %v589 = vsel %vm588, 0, %v587
    %v590 = vsub.s32 32, %v589
    %v591 = vshll.u32 %v582, %v589
    %v592 = vshrl.u32 %v574, %v590
    %v593 = vor.u32 %v591, %v592
    %v594 = vsub.s32 4294967266, %v589
    %v595 = vadd.s32 %v594, 127
    %v596 = vshll.u32 %v595, 23
    %v597 = vor.u32 4788187, %v596
    %v598 = vand.u32 2147483647, %v597
    %v600 = vcvt.s32.f32 %v593
    %v601 = vmul.f32 %v600, %v598
    %v602 = vxor.u32 %v601, 2147483648
    %v603 = vsel %vm520, %v602, %v601
    %v604 = vsub.s32 4, %v580
    %v605 = vsel %vm520, %v604, %v580
    %v606 = vsel %vm519, %v158, %v603
    %v607 = vsel %vm519, 0, %v605
    %v608 = vcosq.f32.pop %v606
    %v609 = vsinq.f32.pop %v606
    %vm610 = vweird.f32 %v158
    %v611 = vadd.s32 %v607, 3
    %v612 = vand.u32 %v611, 3
    %vm613 = vcmp.lt.s32.totalorder %v612, 2
    %vm614 = vcmp.eq.s32.totalorder %v612, 0
    %v615 = vxor.u32 %v609, 2147483648
    %v616 = vsel %vm614, %v608, %v615
    %vm617 = vcmp.eq.s32.totalorder %v612, 2
    %v618 = vxor.u32 %v608, 2147483648
    %v619 = vsel %vm617, %v618, %v609
    %v620 = vsel %vm613, %v616, %v619
    %v621 = vsel %vm610, nan, %v620
    %v622 = vand.u32 2147483647, %v163
    %vm623 = vcmp.le.f32.partialorder %v622, 0.7853982
    %vm624 = vcmp.lt.s32.totalorder %v163, 0
    %v625 = vand.u32 %v163, 2139095040
    %v626 = vshrl.u32 %v625, 23
    %v627 = vsub.s32 %v626, 127
    %v628 = vand.u32 2147483647, %v163
    %v629 = vand.u32 %v628, 8388607
    %v630 = vor.u32 %v629, 8388608
    %v631 = vsub.s32 0, %v630
    %v632 = vadd.s32 %v627, 1
    %vm633 = vcmp.gt.s32.totalorder %v632, 0
    %v634 = vsel %vm633, %v632, 0
    %v635 = vshrl.u32 %v634, 5
    %v636 = vand.u32 %v634, 31
    %v637 = vsub.s32 32, %v636
    %v638 = vshrl.u32 683565275, %v637
    %v639 = vshll.u32 683565275, %v636
    %v640 = vshrl.u32 2475754826, %v637
    %v641 = vor.u32 %v639, %v640
    %v642 = vshll.u32 2475754826, %v636
    %v643 = vshrl.u32 2131351028, %v637
    %v644 = vor.u32 %v642, %v643
    %v645 = vshll.u32 2131351028, %v636
    %v646 = vshrl.u32 2102212464, %v637
    %v647 = vor.u32 %v645, %v646
    %v648 = vshll.u32 2102212464, %v636
    %v649 = vshrl.u32 920167782, %v637
    %v650 = vor.u32 %v648, %v649
    %v651 = vshll.u32 920167782, %v636
    %v652 = vshrl.u32 1326507024, %v637
    %v653 = vor.u32 %v651, %v652
    %vm654 = vcmp.lt.s32.totalorder %v635, 1
    %vm655 = vcmp.lt.s32.totalorder %v635, 2
    %vm656 = vcmp.lt.s32.totalorder %v635, 3
    %vm657 = vcmp.lt.s32.totalorder %v635, 4
    %v658 = vsel %vm654, %v638, %v641
    %v659 = vsel %vm657, %v647, 2102212464
    %v660 = vsel %vm656, %v644, %v659
    %v661 = vsel %vm655, %v658, %v660
    %v662 = vsel %vm654, %v641, %v644
    %v663 = vsel %vm657, %v650, 920167782
    %v664 = vsel %vm656, %v647, %v663
    %v665 = vsel %vm655, %v662, %v664
    %v666 = vsel %vm654, %v644, %v647
    %v667 = vsel %vm657, %v653, 1326507024
    %v668 = vsel %vm656, %v650, %v667
    %v669 = vsel %vm655, %v666, %v668
    %v670 = vshll.u32 %v630, 8
    %v671 = vmul.u32.u64.compose %v670, %v669
    %v672 = vextract.low.u32 %v671
    %v673 = vextract.high.u32 %v671
    %v674 = vmul.u32.u64.compose %v670, %v665
    %v675 = vextract.low.u32 %v674
    %v676 = vextract.high.u32 %v674
    %v677 = vmul.u32 %v670, %v661
    %v678 = vadd.s32 %v673, %v675
    %vm679 = vc.u32 %v673, %v675
    %v680 = vadd.s32 %v676, 1
    %v681 = vsel %vm679, %v680, %v676
    %v682 = vadd.s32 %v677, %v681
    %v683 = vadd.s32 %v682, 536870912
    %v684 = vshrl.u32 %v683, 30
    %v685 = vshll.u32 %v684, 30
    %v686 = vsub.s32 %v682, %v685
    %vm687 = vcmp.lt.s32.totalorder %v686, 0
    %v688 = vsub.s32 0, %v686
    %v689 = vsel %vm687, %v688, %v686
    %v690 = vclz %v689
    %v691 = vsub.s32 %v690, 2
    %vm692 = vcmp.gt.s32.totalorder 0, %v691
    %v693 = vsel %vm692, 0, %v691
    %v694 = vsub.s32 32, %v693
    %v695 = vshll.u32 %v686, %v693
    %v696 = vshrl.u32 %v678, %v694
    %v697 = vor.u32 %v695, %v696
    %v698 = vsub.s32 4294967266, %v693
    %v699 = vadd.s32 %v698, 127
    %v700 = vshll.u32 %v699, 23
    %v701 = vor.u32 4788187, %v700
    %v702 = vand.u32 2147483647, %v701
    %v704 = vcvt.s32.f32 %v697
    %v705 = vmul.f32 %v704, %v702
    %v706 = vxor.u32 %v705, 2147483648
    %v707 = vsel %vm624, %v706, %v705
    %v708 = vsub.s32 4, %v684
    %v709 = vsel %vm624, %v708, %v684
    %v710 = vsel %vm623, %v163, %v707
    %v711 = vsel %vm623, 0, %v709
    %v712 = vcosq.f32.pop %v710
    %v713 = vsinq.f32.pop %v710
    %vm714 = vweird.f32 %v163
    %v715 = vadd.s32 %v711, 3
    %v716 = vand.u32 %v715, 3
    %vm717 = vcmp.lt.s32.totalorder %v716, 2
    %vm718 = vcmp.eq.s32.totalorder %v716, 0
    %v719 = vxor.u32 %v713, 2147483648
    %v720 = vsel %vm718, %v712, %v719
    %vm721 = vcmp.eq.s32.totalorder %v716, 2
    %v722 = vxor.u32 %v712, 2147483648
    %v723 = vsel %vm721, %v722, %v713
    %v724 = vsel %vm717, %v720, %v723
    %v725 = vsel %vm714, nan, %v724
    %v726 = vand.u32 2147483647, %v168
    %vm727 = vcmp.le.f32.partialorder %v726, 0.7853982
    %vm728 = vcmp.lt.s32.totalorder %v168, 0
    %v729 = vand.u32 %v168, 2139095040
    %v730 = vshrl.u32 %v729, 23
    %v731 = vsub.s32 %v730, 127
    %v732 = vand.u32 2147483647, %v168
    %v733 = vand.u32 %v732, 8388607
    %v734 = vor.u32 %v733, 8388608
    %v735 = vsub.s32 0, %v734
    %v736 = vadd.s32 %v731, 1
    %vm737 = vcmp.gt.s32.totalorder %v736, 0
    %v738 = vsel %vm737, %v736, 0
    %v739 = vshrl.u32 %v738, 5
    %v740 = vand.u32 %v738, 31
    %v741 = vsub.s32 32, %v740
    %v742 = vshrl.u32 683565275, %v741
    %v743 = vshll.u32 683565275, %v740
    %v744 = vshrl.u32 2475754826, %v741
    %v745 = vor.u32 %v743, %v744
    %v746 = vshll.u32 2475754826, %v740
    %v747 = vshrl.u32 2131351028, %v741
    %v748 = vor.u32 %v746, %v747
    %v749 = vshll.u32 2131351028, %v740
    %v750 = vshrl.u32 2102212464, %v741
    %v751 = vor.u32 %v749, %v750
    %v752 = vshll.u32 2102212464, %v740
    %v753 = vshrl.u32 920167782, %v741
    %v754 = vor.u32 %v752, %v753
    %v755 = vshll.u32 920167782, %v740
    %v756 = vshrl.u32 1326507024, %v741
    %v757 = vor.u32 %v755, %v756
    %vm758 = vcmp.lt.s32.totalorder %v739, 1
    %vm759 = vcmp.lt.s32.totalorder %v739, 2
    %vm760 = vcmp.lt.s32.totalorder %v739, 3
    %vm761 = vcmp.lt.s32.totalorder %v739, 4
    %v762 = vsel %vm758, %v742, %v745
    %v763 = vsel %vm761, %v751, 2102212464
    %v764 = vsel %vm760, %v748, %v763
    %v765 = vsel %vm759, %v762, %v764
    %v766 = vsel %vm758, %v745, %v748
    %v767 = vsel %vm761, %v754, 920167782
    %v768 = vsel %vm760, %v751, %v767
    %v769 = vsel %vm759, %v766, %v768
    %v770 = vsel %vm758, %v748, %v751
    %v771 = vsel %vm761, %v757, 1326507024
    %v772 = vsel %vm760, %v754, %v771
    %v773 = vsel %vm759, %v770, %v772
    %v774 = vshll.u32 %v734, 8
    %v775 = vmul.u32.u64.compose %v774, %v773
    %v776 = vextract.low.u32 %v775
    %v777 = vextract.high.u32 %v775
    %v778 = vmul.u32.u64.compose %v774, %v769
    %v779 = vextract.low.u32 %v778
    %v780 = vextract.high.u32 %v778
    %v781 = vmul.u32 %v774, %v765
    %v782 = vadd.s32 %v777, %v779
    %vm783 = vc.u32 %v777, %v779
    %v784 = vadd.s32 %v780, 1
    %v785 = vsel %vm783, %v784, %v780
    %v786 = vadd.s32 %v781, %v785
    %v787 = vadd.s32 %v786, 536870912
    %v788 = vshrl.u32 %v787, 30
    %v789 = vshll.u32 %v788, 30
    %v790 = vsub.s32 %v786, %v789
    %vm791 = vcmp.lt.s32.totalorder %v790, 0
    %v792 = vsub.s32 0, %v790
    %v793 = vsel %vm791, %v792, %v790
    %v794 = vclz %v793
    %v795 = vsub.s32 %v794, 2
    %vm796 = vcmp.gt.s32.totalorder 0, %v795
    %v797 = vsel %vm796, 0, %v795
    %v798 = vsub.s32 32, %v797
    %v799 = vshll.u32 %v790, %v797
    %v800 = vshrl.u32 %v782, %v798
    %v801 = vor.u32 %v799, %v800
    %v802 = vsub.s32 4294967266, %v797
    %v803 = vadd.s32 %v802, 127
    %v804 = vshll.u32 %v803, 23
    %v805 = vor.u32 4788187, %v804
    %v806 = vand.u32 2147483647, %v805
    %v808 = vcvt.s32.f32 %v801
    %v809 = vmul.f32 %v808, %v806
    %v810 = vxor.u32 %v809, 2147483648
    %v811 = vsel %vm728, %v810, %v809
    %v812 = vsub.s32 4, %v788
    %v813 = vsel %vm728, %v812, %v788
    %v814 = vsel %vm727, %v168, %v811
    %v815 = vsel %vm727, 0, %v813
    %v816 = vcosq.f32.pop %v814
    %v817 = vsinq.f32.pop %v814
    %vm818 = vweird.f32 %v168
    %v819 = vadd.s32 %v815, 3
    %v820 = vand.u32 %v819, 3
    %vm821 = vcmp.lt.s32.totalorder %v820, 2
    %vm822 = vcmp.eq.s32.totalorder %v820, 0
    %v823 = vxor.u32 %v817, 2147483648
    %v824 = vsel %vm822, %v816, %v823
    %vm825 = vcmp.eq.s32.totalorder %v820, 2
    %v826 = vxor.u32 %v816, 2147483648
    %v827 = vsel %vm825, %v826, %v817
    %v828 = vsel %vm821, %v824, %v827
    %v829 = vsel %vm818, nan, %v828
    %v830 = vand.u32 2147483647, %v173
    %vm831 = vcmp.le.f32.partialorder %v830, 0.7853982
    %vm832 = vcmp.lt.s32.totalorder %v173, 0
    %v833 = vand.u32 %v173, 2139095040
    %v834 = vshrl.u32 %v833, 23
    %v835 = vsub.s32 %v834, 127
    %v836 = vand.u32 2147483647, %v173
    %v837 = vand.u32 %v836, 8388607
    %v838 = vor.u32 %v837, 8388608
    %v839 = vsub.s32 0, %v838
    %v840 = vadd.s32 %v835, 1
    %vm841 = vcmp.gt.s32.totalorder %v840, 0
    %v842 = vsel %vm841, %v840, 0
    %v843 = vshrl.u32 %v842, 5
    %v844 = vand.u32 %v842, 31
    %v845 = vsub.s32 32, %v844
    %v846 = vshrl.u32 683565275, %v845
    %v847 = vshll.u32 683565275, %v844
    %v848 = vshrl.u32 2475754826, %v845
    %v849 = vor.u32 %v847, %v848
    %v850 = vshll.u32 2475754826, %v844
    %v851 = vshrl.u32 2131351028, %v845
    %v852 = vor.u32 %v850, %v851
    %v853 = vshll.u32 2131351028, %v844
    %v854 = vshrl.u32 2102212464, %v845
    %v855 = vor.u32 %v853, %v854
    %v856 = vshll.u32 2102212464, %v844
    %v857 = vshrl.u32 920167782, %v845
    %v858 = vor.u32 %v856, %v857
    %v859 = vshll.u32 920167782, %v844
    %v860 = vshrl.u32 1326507024, %v845
    %v861 = vor.u32 %v859, %v860
    %vm862 = vcmp.lt.s32.totalorder %v843, 1
    %vm863 = vcmp.lt.s32.totalorder %v843, 2
    %vm864 = vcmp.lt.s32.totalorder %v843, 3
    %vm865 = vcmp.lt.s32.totalorder %v843, 4
    %v866 = vsel %vm862, %v846, %v849
    %v867 = vsel %vm865, %v855, 2102212464
    %v868 = vsel %vm864, %v852, %v867
    %v869 = vsel %vm863, %v866, %v868
    %v870 = vsel %vm862, %v849, %v852
    %v871 = vsel %vm865, %v858, 920167782
    %v872 = vsel %vm864, %v855, %v871
    %v873 = vsel %vm863, %v870, %v872
    %v874 = vsel %vm862, %v852, %v855
    %v875 = vsel %vm865, %v861, 1326507024
    %v876 = vsel %vm864, %v858, %v875
    %v877 = vsel %vm863, %v874, %v876
    %v878 = vshll.u32 %v838, 8
    %v879 = vmul.u32.u64.compose %v878, %v877
    %v880 = vextract.low.u32 %v879
    %v881 = vextract.high.u32 %v879
    %v882 = vmul.u32.u64.compose %v878, %v873
    %v883 = vextract.low.u32 %v882
    %v884 = vextract.high.u32 %v882
    %v885 = vmul.u32 %v878, %v869
    %v886 = vadd.s32 %v881, %v883
    %vm887 = vc.u32 %v881, %v883
    %v888 = vadd.s32 %v884, 1
    %v889 = vsel %vm887, %v888, %v884
    %v890 = vadd.s32 %v885, %v889
    %v891 = vadd.s32 %v890, 536870912
    %v892 = vshrl.u32 %v891, 30
    %v893 = vshll.u32 %v892, 30
    %v894 = vsub.s32 %v890, %v893
    %vm895 = vcmp.lt.s32.totalorder %v894, 0
    %v896 = vsub.s32 0, %v894
    %v897 = vsel %vm895, %v896, %v894
    %v898 = vclz %v897
    %v899 = vsub.s32 %v898, 2
    %vm900 = vcmp.gt.s32.totalorder 0, %v899
    %v901 = vsel %vm900, 0, %v899
    %v902 = vsub.s32 32, %v901
    %v903 = vshll.u32 %v894, %v901
    %v904 = vshrl.u32 %v886, %v902
    %v905 = vor.u32 %v903, %v904
    %v906 = vsub.s32 4294967266, %v901
    %v907 = vadd.s32 %v906, 127
    %v908 = vshll.u32 %v907, 23
    %v909 = vor.u32 4788187, %v908
    %v910 = vand.u32 2147483647, %v909
    %v912 = vcvt.s32.f32 %v905
    %v913 = vmul.f32 %v912, %v910
    %v914 = vxor.u32 %v913, 2147483648
    %v915 = vsel %vm832, %v914, %v913
    %v916 = vsub.s32 4, %v892
    %v917 = vsel %vm832, %v916, %v892
    %v918 = vsel %vm831, %v173, %v915
    %v919 = vsel %vm831, 0, %v917
    %v920 = vcosq.f32.pop %v918
    %v921 = vsinq.f32.pop %v918
    %vm922 = vweird.f32 %v173
    %v923 = vadd.s32 %v919, 3
    %v924 = vand.u32 %v923, 3
    %vm925 = vcmp.lt.s32.totalorder %v924, 2
    %vm926 = vcmp.eq.s32.totalorder %v924, 0
    %v927 = vxor.u32 %v921, 2147483648
    %v928 = vsel %vm926, %v920, %v927
    %vm929 = vcmp.eq.s32.totalorder %v924, 2
    %v930 = vxor.u32 %v920, 2147483648
    %v931 = vsel %vm929, %v930, %v921
    %v932 = vsel %vm925, %v928, %v931
    %v933 = vsel %vm922, nan, %v932
    %v934 = vand.u32 2147483647, %v178
    %vm935 = vcmp.le.f32.partialorder %v934, 0.7853982
    %vm936 = vcmp.lt.s32.totalorder %v178, 0
    %v937 = vand.u32 %v178, 2139095040
    %v938 = vshrl.u32 %v937, 23
    %v939 = vsub.s32 %v938, 127
    %v940 = vand.u32 2147483647, %v178
    %v941 = vand.u32 %v940, 8388607
    %v942 = vor.u32 %v941, 8388608
    %v943 = vsub.s32 0, %v942
    %v944 = vadd.s32 %v939, 1
    %vm945 = vcmp.gt.s32.totalorder %v944, 0
    %v946 = vsel %vm945, %v944, 0
    %v947 = vshrl.u32 %v946, 5
    %v948 = vand.u32 %v946, 31
    %v949 = vsub.s32 32, %v948
    %v950 = vshrl.u32 683565275, %v949
    %v951 = vshll.u32 683565275, %v948
    %v952 = vshrl.u32 2475754826, %v949
    %v953 = vor.u32 %v951, %v952
    %v954 = vshll.u32 2475754826, %v948
    %v955 = vshrl.u32 2131351028, %v949
    %v956 = vor.u32 %v954, %v955
    %v957 = vshll.u32 2131351028, %v948
    %v958 = vshrl.u32 2102212464, %v949
    %v959 = vor.u32 %v957, %v958
    %v960 = vshll.u32 2102212464, %v948
    %v961 = vshrl.u32 920167782, %v949
    %v962 = vor.u32 %v960, %v961
    %v963 = vshll.u32 920167782, %v948
    %v964 = vshrl.u32 1326507024, %v949
    %v965 = vor.u32 %v963, %v964
    %vm966 = vcmp.lt.s32.totalorder %v947, 1
    %vm967 = vcmp.lt.s32.totalorder %v947, 2
    %vm968 = vcmp.lt.s32.totalorder %v947, 3
    %vm969 = vcmp.lt.s32.totalorder %v947, 4
    %v970 = vsel %vm966, %v950, %v953
    %v971 = vsel %vm969, %v959, 2102212464
    %v972 = vsel %vm968, %v956, %v971
    %v973 = vsel %vm967, %v970, %v972
    %v974 = vsel %vm966, %v953, %v956
    %v975 = vsel %vm969, %v962, 920167782
    %v976 = vsel %vm968, %v959, %v975
    %v977 = vsel %vm967, %v974, %v976
    %v978 = vsel %vm966, %v956, %v959
    %v979 = vsel %vm969, %v965, 1326507024
    %v980 = vsel %vm968, %v962, %v979
    %v981 = vsel %vm967, %v978, %v980
    %v982 = vshll.u32 %v942, 8
    %v983 = vmul.u32.u64.compose %v982, %v981
    %v984 = vextract.low.u32 %v983
    %v985 = vextract.high.u32 %v983
    %v986 = vmul.u32.u64.compose %v982, %v977
    %v987 = vextract.low.u32 %v986
    %v988 = vextract.high.u32 %v986
    %v989 = vmul.u32 %v982, %v973
    %v990 = vadd.s32 %v985, %v987
    %vm991 = vc.u32 %v985, %v987
    %v992 = vadd.s32 %v988, 1
    %v993 = vsel %vm991, %v992, %v988
    %v994 = vadd.s32 %v989, %v993
    %v995 = vadd.s32 %v994, 536870912
    %v996 = vshrl.u32 %v995, 30
    %v997 = vshll.u32 %v996, 30
    %v998 = vsub.s32 %v994, %v997
    %vm999 = vcmp.lt.s32.totalorder %v998, 0
    %v1000 = vsub.s32 0, %v998
    %v1001 = vsel %vm999, %v1000, %v998
    %v1002 = vclz %v1001
    %v1003 = vsub.s32 %v1002, 2
    %vm1004 = vcmp.gt.s32.totalorder 0, %v1003
    %v1005 = vsel %vm1004, 0, %v1003
    %v1006 = vsub.s32 32, %v1005
    %v1007 = vshll.u32 %v998, %v1005
    %v1008 = vshrl.u32 %v990, %v1006
    %v1009 = vor.u32 %v1007, %v1008
    %v1010 = vsub.s32 4294967266, %v1005
    %v1011 = vadd.s32 %v1010, 127
    %v1012 = vshll.u32 %v1011, 23
    %v1013 = vor.u32 4788187, %v1012
    %v1014 = vand.u32 2147483647, %v1013
    %v1016 = vcvt.s32.f32 %v1009
    %v1017 = vmul.f32 %v1016, %v1014
    %v1018 = vxor.u32 %v1017, 2147483648
    %v1019 = vsel %vm936, %v1018, %v1017
    %v1020 = vsub.s32 4, %v996
    %v1021 = vsel %vm936, %v1020, %v996
    %v1022 = vsel %vm935, %v178, %v1019
    %v1023 = vsel %vm935, 0, %v1021
    %v1024 = vcosq.f32.pop %v1022
    %v1025 = vsinq.f32.pop %v1022
    %vm1026 = vweird.f32 %v178
    %v1027 = vadd.s32 %v1023, 3
    %v1028 = vand.u32 %v1027, 3
    %vm1029 = vcmp.lt.s32.totalorder %v1028, 2
    %vm1030 = vcmp.eq.s32.totalorder %v1028, 0
    %v1031 = vxor.u32 %v1025, 2147483648
    %v1032 = vsel %vm1030, %v1024, %v1031
    %vm1033 = vcmp.eq.s32.totalorder %v1028, 2
    %v1034 = vxor.u32 %v1024, 2147483648
    %v1035 = vsel %vm1033, %v1034, %v1025
    %v1036 = vsel %vm1029, %v1032, %v1035
    %v1037 = vsel %vm1026, nan, %v1036
    %v1038 = vand.u32 2147483647, %v183
    %vm1039 = vcmp.le.f32.partialorder %v1038, 0.7853982
    %vm1040 = vcmp.lt.s32.totalorder %v183, 0
    %v1041 = vand.u32 %v183, 2139095040
    %v1042 = vshrl.u32 %v1041, 23
    %v1043 = vsub.s32 %v1042, 127
    %v1044 = vand.u32 2147483647, %v183
    %v1045 = vand.u32 %v1044, 8388607
    %v1046 = vor.u32 %v1045, 8388608
    %v1047 = vsub.s32 0, %v1046
    %v1048 = vadd.s32 %v1043, 1
    %vm1049 = vcmp.gt.s32.totalorder %v1048, 0
    %v1050 = vsel %vm1049, %v1048, 0
    %v1051 = vshrl.u32 %v1050, 5
    %v1052 = vand.u32 %v1050, 31
    %v1053 = vsub.s32 32, %v1052
    %v1054 = vshrl.u32 683565275, %v1053
    %v1055 = vshll.u32 683565275, %v1052
    %v1056 = vshrl.u32 2475754826, %v1053
    %v1057 = vor.u32 %v1055, %v1056
    %v1058 = vshll.u32 2475754826, %v1052
    %v1059 = vshrl.u32 2131351028, %v1053
    %v1060 = vor.u32 %v1058, %v1059
    %v1061 = vshll.u32 2131351028, %v1052
    %v1062 = vshrl.u32 2102212464, %v1053
    %v1063 = vor.u32 %v1061, %v1062
    %v1064 = vshll.u32 2102212464, %v1052
    %v1065 = vshrl.u32 920167782, %v1053
    %v1066 = vor.u32 %v1064, %v1065
    %v1067 = vshll.u32 920167782, %v1052
    %v1068 = vshrl.u32 1326507024, %v1053
    %v1069 = vor.u32 %v1067, %v1068
    %vm1070 = vcmp.lt.s32.totalorder %v1051, 1
    %vm1071 = vcmp.lt.s32.totalorder %v1051, 2
    %vm1072 = vcmp.lt.s32.totalorder %v1051, 3
    %vm1073 = vcmp.lt.s32.totalorder %v1051, 4
    %v1074 = vsel %vm1070, %v1054, %v1057
    %v1075 = vsel %vm1073, %v1063, 2102212464
    %v1076 = vsel %vm1072, %v1060, %v1075
    %v1077 = vsel %vm1071, %v1074, %v1076
    %v1078 = vsel %vm1070, %v1057, %v1060
    %v1079 = vsel %vm1073, %v1066, 920167782
    %v1080 = vsel %vm1072, %v1063, %v1079
    %v1081 = vsel %vm1071, %v1078, %v1080
    %v1082 = vsel %vm1070, %v1060, %v1063
    %v1083 = vsel %vm1073, %v1069, 1326507024
    %v1084 = vsel %vm1072, %v1066, %v1083
    %v1085 = vsel %vm1071, %v1082, %v1084
    %v1086 = vshll.u32 %v1046, 8
    %v1087 = vmul.u32.u64.compose %v1086, %v1085
    %v1088 = vextract.low.u32 %v1087
    %v1089 = vextract.high.u32 %v1087
    %v1090 = vmul.u32.u64.compose %v1086, %v1081
    %v1091 = vextract.low.u32 %v1090
    %v1092 = vextract.high.u32 %v1090
    %v1093 = vmul.u32 %v1086, %v1077
    %v1094 = vadd.s32 %v1089, %v1091
    %vm1095 = vc.u32 %v1089, %v1091
    %v1096 = vadd.s32 %v1092, 1
    %v1097 = vsel %vm1095, %v1096, %v1092
    %v1098 = vadd.s32 %v1093, %v1097
    %v1099 = vadd.s32 %v1098, 536870912
    %v1100 = vshrl.u32 %v1099, 30
    %v1101 = vshll.u32 %v1100, 30
    %v1102 = vsub.s32 %v1098, %v1101
    %vm1103 = vcmp.lt.s32.totalorder %v1102, 0
    %v1104 = vsub.s32 0, %v1102
    %v1105 = vsel %vm1103, %v1104, %v1102
    %v1106 = vclz %v1105
    %v1107 = vsub.s32 %v1106, 2
    %vm1108 = vcmp.gt.s32.totalorder 0, %v1107
    %v1109 = vsel %vm1108, 0, %v1107
    %v1110 = vsub.s32 32, %v1109
    %v1111 = vshll.u32 %v1102, %v1109
    %v1112 = vshrl.u32 %v1094, %v1110
    %v1113 = vor.u32 %v1111, %v1112
    %v1114 = vsub.s32 4294967266, %v1109
    %v1115 = vadd.s32 %v1114, 127
    %v1116 = vshll.u32 %v1115, 23
    %v1117 = vor.u32 4788187, %v1116
    %v1118 = vand.u32 2147483647, %v1117
    %v1120 = vcvt.s32.f32 %v1113
    %v1121 = vmul.f32 %v1120, %v1118
    %v1122 = vxor.u32 %v1121, 2147483648
    %v1123 = vsel %vm1040, %v1122, %v1121
    %v1124 = vsub.s32 4, %v1100
    %v1125 = vsel %vm1040, %v1124, %v1100
    %v1126 = vsel %vm1039, %v183, %v1123
    %v1127 = vsel %vm1039, 0, %v1125
    %v1128 = vcosq.f32.pop %v1126
    %v1129 = vsinq.f32.pop %v1126
    %vm1130 = vweird.f32 %v183
    %v1131 = vadd.s32 %v1127, 3
    %v1132 = vand.u32 %v1131, 3
    %vm1133 = vcmp.lt.s32.totalorder %v1132, 2
    %vm1134 = vcmp.eq.s32.totalorder %v1132, 0
    %v1135 = vxor.u32 %v1129, 2147483648
    %v1136 = vsel %vm1134, %v1128, %v1135
    %vm1137 = vcmp.eq.s32.totalorder %v1132, 2
    %v1138 = vxor.u32 %v1128, 2147483648
    %v1139 = vsel %vm1137, %v1138, %v1129
    %v1140 = vsel %vm1133, %v1136, %v1139
    %v1141 = vsel %vm1130, nan, %v1140
    %v1142 = vand.u32 2147483647, %v188
    %vm1143 = vcmp.le.f32.partialorder %v1142, 0.7853982
    %vm1144 = vcmp.lt.s32.totalorder %v188, 0
    %v1145 = vand.u32 %v188, 2139095040
    %v1146 = vshrl.u32 %v1145, 23
    %v1147 = vsub.s32 %v1146, 127
    %v1148 = vand.u32 2147483647, %v188
    %v1149 = vand.u32 %v1148, 8388607
    %v1150 = vor.u32 %v1149, 8388608
    %v1151 = vsub.s32 0, %v1150
    %v1152 = vadd.s32 %v1147, 1
    %vm1153 = vcmp.gt.s32.totalorder %v1152, 0
    %v1154 = vsel %vm1153, %v1152, 0
    %v1155 = vshrl.u32 %v1154, 5
    %v1156 = vand.u32 %v1154, 31
    %v1157 = vsub.s32 32, %v1156
    %v1158 = vshrl.u32 683565275, %v1157
    %v1159 = vshll.u32 683565275, %v1156
    %v1160 = vshrl.u32 2475754826, %v1157
    %v1161 = vor.u32 %v1159, %v1160
    %v1162 = vshll.u32 2475754826, %v1156
    %v1163 = vshrl.u32 2131351028, %v1157
    %v1164 = vor.u32 %v1162, %v1163
    %v1165 = vshll.u32 2131351028, %v1156
    %v1166 = vshrl.u32 2102212464, %v1157
    %v1167 = vor.u32 %v1165, %v1166
    %v1168 = vshll.u32 2102212464, %v1156
    %v1169 = vshrl.u32 920167782, %v1157
    %v1170 = vor.u32 %v1168, %v1169
    %v1171 = vshll.u32 920167782, %v1156
    %v1172 = vshrl.u32 1326507024, %v1157
    %v1173 = vor.u32 %v1171, %v1172
    %vm1174 = vcmp.lt.s32.totalorder %v1155, 1
    %vm1175 = vcmp.lt.s32.totalorder %v1155, 2
    %vm1176 = vcmp.lt.s32.totalorder %v1155, 3
    %vm1177 = vcmp.lt.s32.totalorder %v1155, 4
    %v1178 = vsel %vm1174, %v1158, %v1161
    %v1179 = vsel %vm1177, %v1167, 2102212464
    %v1180 = vsel %vm1176, %v1164, %v1179
    %v1181 = vsel %vm1175, %v1178, %v1180
    %v1182 = vsel %vm1174, %v1161, %v1164
    %v1183 = vsel %vm1177, %v1170, 920167782
    %v1184 = vsel %vm1176, %v1167, %v1183
    %v1185 = vsel %vm1175, %v1182, %v1184
    %v1186 = vsel %vm1174, %v1164, %v1167
    %v1187 = vsel %vm1177, %v1173, 1326507024
    %v1188 = vsel %vm1176, %v1170, %v1187
    %v1189 = vsel %vm1175, %v1186, %v1188
    %v1190 = vshll.u32 %v1150, 8
    %v1191 = vmul.u32.u64.compose %v1190, %v1189
    %v1192 = vextract.low.u32 %v1191
    %v1193 = vextract.high.u32 %v1191
    %v1194 = vmul.u32.u64.compose %v1190, %v1185
    %v1195 = vextract.low.u32 %v1194
    %v1196 = vextract.high.u32 %v1194
    %v1197 = vmul.u32 %v1190, %v1181
    %v1198 = vadd.s32 %v1193, %v1195
    %vm1199 = vc.u32 %v1193, %v1195
    %v1200 = vadd.s32 %v1196, 1
    %v1201 = vsel %vm1199, %v1200, %v1196
    %v1202 = vadd.s32 %v1197, %v1201
    %v1203 = vadd.s32 %v1202, 536870912
    %v1204 = vshrl.u32 %v1203, 30
    %v1205 = vshll.u32 %v1204, 30
    %v1206 = vsub.s32 %v1202, %v1205
    %vm1207 = vcmp.lt.s32.totalorder %v1206, 0
    %v1208 = vsub.s32 0, %v1206
    %v1209 = vsel %vm1207, %v1208, %v1206
    %v1210 = vclz %v1209
    %v1211 = vsub.s32 %v1210, 2
    %vm1212 = vcmp.gt.s32.totalorder 0, %v1211
    %v1213 = vsel %vm1212, 0, %v1211
    %v1214 = vsub.s32 32, %v1213
    %v1215 = vshll.u32 %v1206, %v1213
    %v1216 = vshrl.u32 %v1198, %v1214
    %v1217 = vor.u32 %v1215, %v1216
    %v1218 = vsub.s32 4294967266, %v1213
    %v1219 = vadd.s32 %v1218, 127
    %v1220 = vshll.u32 %v1219, 23
    %v1221 = vor.u32 4788187, %v1220
    %v1222 = vand.u32 2147483647, %v1221
    %v1224 = vcvt.s32.f32 %v1217
    %v1225 = vmul.f32 %v1224, %v1222
    %v1226 = vxor.u32 %v1225, 2147483648
    %v1227 = vsel %vm1144, %v1226, %v1225
    %v1228 = vsub.s32 4, %v1204
    %v1229 = vsel %vm1144, %v1228, %v1204
    %v1230 = vsel %vm1143, %v188, %v1227
    %v1231 = vsel %vm1143, 0, %v1229
    %v1232 = vcosq.f32.pop %v1230
    %v1233 = vsinq.f32.pop %v1230
    %vm1234 = vweird.f32 %v188
    %v1235 = vadd.s32 %v1231, 3
    %v1236 = vand.u32 %v1235, 3
    %vm1237 = vcmp.lt.s32.totalorder %v1236, 2
    %vm1238 = vcmp.eq.s32.totalorder %v1236, 0
    %v1239 = vxor.u32 %v1233, 2147483648
    %v1240 = vsel %vm1238, %v1232, %v1239
    %vm1241 = vcmp.eq.s32.totalorder %v1236, 2
    %v1242 = vxor.u32 %v1232, 2147483648
    %v1243 = vsel %vm1241, %v1242, %v1233
    %v1244 = vsel %vm1237, %v1240, %v1243
    %v1245 = vsel %vm1234, nan, %v1244
    %v1246 = vand.u32 2147483647, %v193
    %vm1247 = vcmp.le.f32.partialorder %v1246, 0.7853982
    %vm1248 = vcmp.lt.s32.totalorder %v193, 0
    %v1249 = vand.u32 %v193, 2139095040
    %v1250 = vshrl.u32 %v1249, 23
    %v1251 = vsub.s32 %v1250, 127
    %v1252 = vand.u32 2147483647, %v193
    %v1253 = vand.u32 %v1252, 8388607
    %v1254 = vor.u32 %v1253, 8388608
    %v1255 = vsub.s32 0, %v1254
    %v1256 = vadd.s32 %v1251, 1
    %vm1257 = vcmp.gt.s32.totalorder %v1256, 0
    %v1258 = vsel %vm1257, %v1256, 0
    %v1259 = vshrl.u32 %v1258, 5
    %v1260 = vand.u32 %v1258, 31
    %v1261 = vsub.s32 32, %v1260
    %v1262 = vshrl.u32 683565275, %v1261
    %v1263 = vshll.u32 683565275, %v1260
    %v1264 = vshrl.u32 2475754826, %v1261
    %v1265 = vor.u32 %v1263, %v1264
    %v1266 = vshll.u32 2475754826, %v1260
    %v1267 = vshrl.u32 2131351028, %v1261
    %v1268 = vor.u32 %v1266, %v1267
    %v1269 = vshll.u32 2131351028, %v1260
    %v1270 = vshrl.u32 2102212464, %v1261
    %v1271 = vor.u32 %v1269, %v1270
    %v1272 = vshll.u32 2102212464, %v1260
    %v1273 = vshrl.u32 920167782, %v1261
    %v1274 = vor.u32 %v1272, %v1273
    %v1275 = vshll.u32 920167782, %v1260
    %v1276 = vshrl.u32 1326507024, %v1261
    %v1277 = vor.u32 %v1275, %v1276
    %vm1278 = vcmp.lt.s32.totalorder %v1259, 1
    %vm1279 = vcmp.lt.s32.totalorder %v1259, 2
    %vm1280 = vcmp.lt.s32.totalorder %v1259, 3
    %vm1281 = vcmp.lt.s32.totalorder %v1259, 4
    %v1282 = vsel %vm1278, %v1262, %v1265
    %v1283 = vsel %vm1281, %v1271, 2102212464
    %v1284 = vsel %vm1280, %v1268, %v1283
    %v1285 = vsel %vm1279, %v1282, %v1284
    %v1286 = vsel %vm1278, %v1265, %v1268
    %v1287 = vsel %vm1281, %v1274, 920167782
    %v1288 = vsel %vm1280, %v1271, %v1287
    %v1289 = vsel %vm1279, %v1286, %v1288
    %v1290 = vsel %vm1278, %v1268, %v1271
    %v1291 = vsel %vm1281, %v1277, 1326507024
    %v1292 = vsel %vm1280, %v1274, %v1291
    %v1293 = vsel %vm1279, %v1290, %v1292
    %v1294 = vshll.u32 %v1254, 8
    %v1295 = vmul.u32.u64.compose %v1294, %v1293
    %v1296 = vextract.low.u32 %v1295
    %v1297 = vextract.high.u32 %v1295
    %v1298 = vmul.u32.u64.compose %v1294, %v1289
    %v1299 = vextract.low.u32 %v1298
    %v1300 = vextract.high.u32 %v1298
    %v1301 = vmul.u32 %v1294, %v1285
    %v1302 = vadd.s32 %v1297, %v1299
    %vm1303 = vc.u32 %v1297, %v1299
    %v1304 = vadd.s32 %v1300, 1
    %v1305 = vsel %vm1303, %v1304, %v1300
    %v1306 = vadd.s32 %v1301, %v1305
    %v1307 = vadd.s32 %v1306, 536870912
    %v1308 = vshrl.u32 %v1307, 30
    %v1309 = vshll.u32 %v1308, 30
    %v1310 = vsub.s32 %v1306, %v1309
    %vm1311 = vcmp.lt.s32.totalorder %v1310, 0
    %v1312 = vsub.s32 0, %v1310
    %v1313 = vsel %vm1311, %v1312, %v1310
    %v1314 = vclz %v1313
    %v1315 = vsub.s32 %v1314, 2
    %vm1316 = vcmp.gt.s32.totalorder 0, %v1315
    %v1317 = vsel %vm1316, 0, %v1315
    %v1318 = vsub.s32 32, %v1317
    %v1319 = vshll.u32 %v1310, %v1317
    %v1320 = vshrl.u32 %v1302, %v1318
    %v1321 = vor.u32 %v1319, %v1320
    %v1322 = vsub.s32 4294967266, %v1317
    %v1323 = vadd.s32 %v1322, 127
    %v1324 = vshll.u32 %v1323, 23
    %v1325 = vor.u32 4788187, %v1324
    %v1326 = vand.u32 2147483647, %v1325
    %v1328 = vcvt.s32.f32 %v1321
    %v1329 = vmul.f32 %v1328, %v1326
    %v1330 = vxor.u32 %v1329, 2147483648
    %v1331 = vsel %vm1248, %v1330, %v1329
    %v1332 = vsub.s32 4, %v1308
    %v1333 = vsel %vm1248, %v1332, %v1308
    %v1334 = vsel %vm1247, %v193, %v1331
    %v1335 = vsel %vm1247, 0, %v1333
    %v1336 = vcosq.f32.pop %v1334
    %v1337 = vsinq.f32.pop %v1334
    %vm1338 = vweird.f32 %v193
    %v1339 = vadd.s32 %v1335, 3
    %v1340 = vand.u32 %v1339, 3
    %vm1341 = vcmp.lt.s32.totalorder %v1340, 2
    %vm1342 = vcmp.eq.s32.totalorder %v1340, 0
    %v1343 = vxor.u32 %v1337, 2147483648
    %v1344 = vsel %vm1342, %v1336, %v1343
    %vm1345 = vcmp.eq.s32.totalorder %v1340, 2
    %v1346 = vxor.u32 %v1336, 2147483648
    %v1347 = vsel %vm1345, %v1346, %v1337
    %v1348 = vsel %vm1341, %v1344, %v1347
    %v1349 = vsel %vm1338, nan, %v1348
    %v1350 = vand.u32 2147483647, %v198
    %vm1351 = vcmp.le.f32.partialorder %v1350, 0.7853982
    %vm1352 = vcmp.lt.s32.totalorder %v198, 0
    %v1353 = vand.u32 %v198, 2139095040
    %v1354 = vshrl.u32 %v1353, 23
    %v1355 = vsub.s32 %v1354, 127
    %v1356 = vand.u32 2147483647, %v198
    %v1357 = vand.u32 %v1356, 8388607
    %v1358 = vor.u32 %v1357, 8388608
    %v1359 = vsub.s32 0, %v1358
    %v1360 = vadd.s32 %v1355, 1
    %vm1361 = vcmp.gt.s32.totalorder %v1360, 0
    %v1362 = vsel %vm1361, %v1360, 0
    %v1363 = vshrl.u32 %v1362, 5
    %v1364 = vand.u32 %v1362, 31
    %v1365 = vsub.s32 32, %v1364
    %v1366 = vshrl.u32 683565275, %v1365
    %v1367 = vshll.u32 683565275, %v1364
    %v1368 = vshrl.u32 2475754826, %v1365
    %v1369 = vor.u32 %v1367, %v1368
    %v1370 = vshll.u32 2475754826, %v1364
    %v1371 = vshrl.u32 2131351028, %v1365
    %v1372 = vor.u32 %v1370, %v1371
    %v1373 = vshll.u32 2131351028, %v1364
    %v1374 = vshrl.u32 2102212464, %v1365
    %v1375 = vor.u32 %v1373, %v1374
    %v1376 = vshll.u32 2102212464, %v1364
    %v1377 = vshrl.u32 920167782, %v1365
    %v1378 = vor.u32 %v1376, %v1377
    %v1379 = vshll.u32 920167782, %v1364
    %v1380 = vshrl.u32 1326507024, %v1365
    %v1381 = vor.u32 %v1379, %v1380
    %vm1382 = vcmp.lt.s32.totalorder %v1363, 1
    %vm1383 = vcmp.lt.s32.totalorder %v1363, 2
    %vm1384 = vcmp.lt.s32.totalorder %v1363, 3
    %vm1385 = vcmp.lt.s32.totalorder %v1363, 4
    %v1386 = vsel %vm1382, %v1366, %v1369
    %v1387 = vsel %vm1385, %v1375, 2102212464
    %v1388 = vsel %vm1384, %v1372, %v1387
    %v1389 = vsel %vm1383, %v1386, %v1388
    %v1390 = vsel %vm1382, %v1369, %v1372
    %v1391 = vsel %vm1385, %v1378, 920167782
    %v1392 = vsel %vm1384, %v1375, %v1391
    %v1393 = vsel %vm1383, %v1390, %v1392
    %v1394 = vsel %vm1382, %v1372, %v1375
    %v1395 = vsel %vm1385, %v1381, 1326507024
    %v1396 = vsel %vm1384, %v1378, %v1395
    %v1397 = vsel %vm1383, %v1394, %v1396
    %v1398 = vshll.u32 %v1358, 8
    %v1399 = vmul.u32.u64.compose %v1398, %v1397
    %v1400 = vextract.low.u32 %v1399
    %v1401 = vextract.high.u32 %v1399
    %v1402 = vmul.u32.u64.compose %v1398, %v1393
    %v1403 = vextract.low.u32 %v1402
    %v1404 = vextract.high.u32 %v1402
    %v1405 = vmul.u32 %v1398, %v1389
    %v1406 = vadd.s32 %v1401, %v1403
    %vm1407 = vc.u32 %v1401, %v1403
    %v1408 = vadd.s32 %v1404, 1
    %v1409 = vsel %vm1407, %v1408, %v1404
    %v1410 = vadd.s32 %v1405, %v1409
    %v1411 = vadd.s32 %v1410, 536870912
    %v1412 = vshrl.u32 %v1411, 30
    %v1413 = vshll.u32 %v1412, 30
    %v1414 = vsub.s32 %v1410, %v1413
    %vm1415 = vcmp.lt.s32.totalorder %v1414, 0
    %v1416 = vsub.s32 0, %v1414
    %v1417 = vsel %vm1415, %v1416, %v1414
    %v1418 = vclz %v1417
    %v1419 = vsub.s32 %v1418, 2
    %vm1420 = vcmp.gt.s32.totalorder 0, %v1419
    %v1421 = vsel %vm1420, 0, %v1419
    %v1422 = vsub.s32 32, %v1421
    %v1423 = vshll.u32 %v1414, %v1421
    %v1424 = vshrl.u32 %v1406, %v1422
    %v1425 = vor.u32 %v1423, %v1424
    %v1426 = vsub.s32 4294967266, %v1421
    %v1427 = vadd.s32 %v1426, 127
    %v1428 = vshll.u32 %v1427, 23
    %v1429 = vor.u32 4788187, %v1428
    %v1430 = vand.u32 2147483647, %v1429
    %v1432 = vcvt.s32.f32 %v1425
    %v1433 = vmul.f32 %v1432, %v1430
    %v1434 = vxor.u32 %v1433, 2147483648
    %v1435 = vsel %vm1352, %v1434, %v1433
    %v1436 = vsub.s32 4, %v1412
    %v1437 = vsel %vm1352, %v1436, %v1412
    %v1438 = vsel %vm1351, %v198, %v1435
    %v1439 = vsel %vm1351, 0, %v1437
    %v1440 = vcosq.f32.pop %v1438
    %v1441 = vsinq.f32.pop %v1438
    %vm1442 = vweird.f32 %v198
    %v1443 = vadd.s32 %v1439, 3
    %v1444 = vand.u32 %v1443, 3
    %vm1445 = vcmp.lt.s32.totalorder %v1444, 2
    %vm1446 = vcmp.eq.s32.totalorder %v1444, 0
    %v1447 = vxor.u32 %v1441, 2147483648
    %v1448 = vsel %vm1446, %v1440, %v1447
    %vm1449 = vcmp.eq.s32.totalorder %v1444, 2
    %v1450 = vxor.u32 %v1440, 2147483648
    %v1451 = vsel %vm1449, %v1450, %v1441
    %v1452 = vsel %vm1445, %v1448, %v1451
    %v1453 = vsel %vm1442, nan, %v1452
    %v1454 = vand.u32 2147483647, %v203
    %vm1455 = vcmp.le.f32.partialorder %v1454, 0.7853982
    %vm1456 = vcmp.lt.s32.totalorder %v203, 0
    %v1457 = vand.u32 %v203, 2139095040
    %v1458 = vshrl.u32 %v1457, 23
    %v1459 = vsub.s32 %v1458, 127
    %v1460 = vand.u32 2147483647, %v203
    %v1461 = vand.u32 %v1460, 8388607
    %v1462 = vor.u32 %v1461, 8388608
    %v1463 = vsub.s32 0, %v1462
    %v1464 = vadd.s32 %v1459, 1
    %vm1465 = vcmp.gt.s32.totalorder %v1464, 0
    %v1466 = vsel %vm1465, %v1464, 0
    %v1467 = vshrl.u32 %v1466, 5
    %v1468 = vand.u32 %v1466, 31
    %v1469 = vsub.s32 32, %v1468
    %v1470 = vshrl.u32 683565275, %v1469
    %v1471 = vshll.u32 683565275, %v1468
    %v1472 = vshrl.u32 2475754826, %v1469
    %v1473 = vor.u32 %v1471, %v1472
    %v1474 = vshll.u32 2475754826, %v1468
    %v1475 = vshrl.u32 2131351028, %v1469
    %v1476 = vor.u32 %v1474, %v1475
    %v1477 = vshll.u32 2131351028, %v1468
    %v1478 = vshrl.u32 2102212464, %v1469
    %v1479 = vor.u32 %v1477, %v1478
    %v1480 = vshll.u32 2102212464, %v1468
    %v1481 = vshrl.u32 920167782, %v1469
    %v1482 = vor.u32 %v1480, %v1481
    %v1483 = vshll.u32 920167782, %v1468
    %v1484 = vshrl.u32 1326507024, %v1469
    %v1485 = vor.u32 %v1483, %v1484
    %vm1486 = vcmp.lt.s32.totalorder %v1467, 1
    %vm1487 = vcmp.lt.s32.totalorder %v1467, 2
    %vm1488 = vcmp.lt.s32.totalorder %v1467, 3
    %vm1489 = vcmp.lt.s32.totalorder %v1467, 4
    %v1490 = vsel %vm1486, %v1470, %v1473
    %v1491 = vsel %vm1489, %v1479, 2102212464
    %v1492 = vsel %vm1488, %v1476, %v1491
    %v1493 = vsel %vm1487, %v1490, %v1492
    %v1494 = vsel %vm1486, %v1473, %v1476
    %v1495 = vsel %vm1489, %v1482, 920167782
    %v1496 = vsel %vm1488, %v1479, %v1495
    %v1497 = vsel %vm1487, %v1494, %v1496
    %v1498 = vsel %vm1486, %v1476, %v1479
    %v1499 = vsel %vm1489, %v1485, 1326507024
    %v1500 = vsel %vm1488, %v1482, %v1499
    %v1501 = vsel %vm1487, %v1498, %v1500
    %v1502 = vshll.u32 %v1462, 8
    %v1503 = vmul.u32.u64.compose %v1502, %v1501
    %v1504 = vextract.low.u32 %v1503
    %v1505 = vextract.high.u32 %v1503
    %v1506 = vmul.u32.u64.compose %v1502, %v1497
    %v1507 = vextract.low.u32 %v1506
    %v1508 = vextract.high.u32 %v1506
    %v1509 = vmul.u32 %v1502, %v1493
    %v1510 = vadd.s32 %v1505, %v1507
    %vm1511 = vc.u32 %v1505, %v1507
    %v1512 = vadd.s32 %v1508, 1
    %v1513 = vsel %vm1511, %v1512, %v1508
    %v1514 = vadd.s32 %v1509, %v1513
    %v1515 = vadd.s32 %v1514, 536870912
    %v1516 = vshrl.u32 %v1515, 30
    %v1517 = vshll.u32 %v1516, 30
    %v1518 = vsub.s32 %v1514, %v1517
    %vm1519 = vcmp.lt.s32.totalorder %v1518, 0
    %v1520 = vsub.s32 0, %v1518
    %v1521 = vsel %vm1519, %v1520, %v1518
    %v1522 = vclz %v1521
    %v1523 = vsub.s32 %v1522, 2
    %vm1524 = vcmp.gt.s32.totalorder 0, %v1523
    %v1525 = vsel %vm1524, 0, %v1523
    %v1526 = vsub.s32 32, %v1525
    %v1527 = vshll.u32 %v1518, %v1525
    %v1528 = vshrl.u32 %v1510, %v1526
    %v1529 = vor.u32 %v1527, %v1528
    %v1530 = vsub.s32 4294967266, %v1525
    %v1531 = vadd.s32 %v1530, 127
    %v1532 = vshll.u32 %v1531, 23
    %v1533 = vor.u32 4788187, %v1532
    %v1534 = vand.u32 2147483647, %v1533
    %v1536 = vcvt.s32.f32 %v1529
    %v1537 = vmul.f32 %v1536, %v1534
    %v1538 = vxor.u32 %v1537, 2147483648
    %v1539 = vsel %vm1456, %v1538, %v1537
    %v1540 = vsub.s32 4, %v1516
    %v1541 = vsel %vm1456, %v1540, %v1516
    %v1542 = vsel %vm1455, %v203, %v1539
    %v1543 = vsel %vm1455, 0, %v1541
    %v1544 = vcosq.f32.pop %v1542
    %v1545 = vsinq.f32.pop %v1542
    %vm1546 = vweird.f32 %v203
    %v1547 = vadd.s32 %v1543, 3
    %v1548 = vand.u32 %v1547, 3
    %vm1549 = vcmp.lt.s32.totalorder %v1548, 2
    %vm1550 = vcmp.eq.s32.totalorder %v1548, 0
    %v1551 = vxor.u32 %v1545, 2147483648
    %v1552 = vsel %vm1550, %v1544, %v1551
    %vm1553 = vcmp.eq.s32.totalorder %v1548, 2
    %v1554 = vxor.u32 %v1544, 2147483648
    %v1555 = vsel %vm1553, %v1554, %v1545
    %v1556 = vsel %vm1549, %v1552, %v1555
    %v1557 = vsel %vm1546, nan, %v1556
    %1558 = vst [vmem:[#allocation2] sm:$0xff] %v309
    %1559 = vst [vmem:[#allocation2 + $0x8] sm:$0xff] %v413
    %1560 = vst [vmem:[#allocation2 + $0x10] sm:$0xff] %v517
    %1561 = vst [vmem:[#allocation2 + $0x18] sm:$0xff] %v621
    %1562 = vst [vmem:[#allocation2 + $0x20] sm:$0xff] %v725
    %1563 = vst [vmem:[#allocation2 + $0x28] sm:$0xff] %v829
    %1564 = vst [vmem:[#allocation2 + $0x30] sm:$0xff] %v933
    %1565 = vst [vmem:[#allocation2 + $0x38] sm:$0xff] %v1037
    %1566 = vst [vmem:[#allocation2 + $0x40] sm:$0xff] %v1141
    %1567 = vst [vmem:[#allocation2 + $0x48] sm:$0xff] %v1245
    %1568 = vst [vmem:[#allocation2 + $0x50] sm:$0xff] %v1349
    %1569 = vst [vmem:[#allocation2 + $0x58] sm:$0xff] %v1453
    %1570 = vst [vmem:[#allocation2 + $0x60] sm:$0xff] %v1557
    // Predicated region
    $region14: #{sine_layer_forward.1} parent=1 // pred_check
      _
    $region15: #{sine_layer_forward.1} parent=1 // pred_check_branch
      %1572 = sbr.rel (0) target = $region17
    $region16: #{sine_layer_forward.1} parent=1 // pred_region
      %s1574 = ssub.s32 1664, 1664
      %1575 = vsyncadd [#allocation3], %s1574
      %s1576 = sshll.u32 [#allocation2], 4
      %s1577 = int_to_ptr.vmem [resolvable:$true] %s1576
      %1582 = dma.vmem_to_hbm [thread:$0]  %s1577, 1664, %s3, [#allocation3], 128, 128, 8
    $region17: #{sine_layer_forward.1} parent=1 // pred_fallthru
      _
    // Predicated region
    $region18: #{sine_layer_forward.1} parent=1 // pred_check
      _
    $region19: #{sine_layer_forward.1} parent=1 // pred_check_branch
      %1584 = sbr.rel (0) target = $region21
    $region20: #{sine_layer_forward.1} parent=1 // pred_region
      %1585 = dma.done [#allocation3], 1664
    $region21: #{sine_layer_forward.1} parent=1 // pred_fallthru
      _
    %1586 = vsyncpa [#allocation3], 1

</llo_original>
